<compile_context>
chip_gen: v7x
topology: tpu7x:2x2x1
jax: 0.10.0
libtpu: 0.0.40
codegen_flags: <defaults>
</compile_context>

<pallas_src>
import jax
import jax.numpy as jnp
from jax import lax
from jax.experimental import pallas as pl
from jax.experimental.pallas import tpu as pltpu


def _round_up(x, m):
    return (x + m - 1) // m * m


def _rnn_fused_kernel(tok_ref,      # (T*B_pad, 1)    int32  time-major token ids
                      embproj_ref,  # (V_pad, H_pad)  f32    emb @ W_ih^T, zero-padded
                      whh_ref,      # (H_pad, H_pad)  f32    W_hh^T, zero-padded
                      b_ref,        # (1, H_pad)      f32    b_ih + b_hh, zero-padded
                      wfc_ref,      # (H_pad, O_pad)  f32    W_fc^T, zero-padded
                      bfc_ref,      # (1, O_pad)      f32    b_fc, zero-padded
                      out_ref,      # (B_pad, O_pad)  f32
                      pre_scr):     # (T, B_pad, H_pad) f32  VMEM scratch
    T, B_pad, H_pad = pre_scr.shape
    TB = tok_ref.shape[0]
    V_pad = embproj_ref.shape[0]

    # ---- Phase 1+2 fused: one-hot MXU gather of the pre-projected embeddings.
    ids = tok_ref[...]                                               # (TB, 1) int32
    iota = lax.broadcasted_iota(jnp.int32, (TB, V_pad), 1)           # lane index
    onehot = (iota == ids).astype(jnp.float32)                       # (TB, V_pad)
    pre = (jnp.dot(onehot, embproj_ref[...],
                   preferred_element_type=jnp.float32)
           + b_ref[...])                                             # (TB, H_pad)
    pre_scr[...] = pre.reshape(T, B_pad, H_pad)                      # aligned staging

    # ---- Phase 3: sequential recurrence over T (parallel over padded batch).
    whh = whh_ref[...]                                               # load once

    def step(t, h):
        return jnp.tanh(pre_scr[t]
                        + jnp.dot(h, whh, preferred_element_type=jnp.float32))

    h = lax.fori_loop(0, T, step,
                      jnp.zeros((B_pad, H_pad), jnp.float32), unroll=True)

    # ---- Phase 4: lane-dense output projection (unmasked stores).
    out_ref[...] = (jnp.dot(h, wfc_ref[...],
                            preferred_element_type=jnp.float32)
                    + bfc_ref[...]).astype(out_ref.dtype)


@jax.jit
def simple_rnn_with_embeddings(text, params):
    """text: (B, T) int token ids. Returns (B, output_dim) float32."""
    B, T = text.shape
    emb = params["embedding"].astype(jnp.float32)      # (V, E), row 0 zeros
    V, E = emb.shape
    H = params["w_hh"].shape[0]
    O = params["w_fc"].shape[0]

    B_pad = _round_up(max(B, 8), 8)                    # sublane-full batch
    H_pad = _round_up(max(H, 128), 128)                # lane-dense hidden state
    O_pad = _round_up(max(O, 128), 128)                # lane-dense output
    V_pad = _round_up(max(V, 128), 128)                # lane-dense one-hot contraction

    # Time-major token ids; padded batch rows use token 0 (results sliced off).
    text_p = jnp.zeros((B_pad, T), jnp.int32).at[:B, :].set(text.astype(jnp.int32))
    tok_tm = text_p.T.reshape(T * B_pad, 1)            # row t*B_pad + b = text[b, t]

    # Pre-project the embedding table through W_ih^T once (tiny one-time matmul).
    emb_proj = emb @ params["w_ih"].T.astype(jnp.float32)                  # (V, H)
    emb_proj_p = jnp.zeros((V_pad, H_pad), jnp.float32).at[:V, :H].set(emb_proj)

    w_hh_p = jnp.zeros((H_pad, H_pad), jnp.float32).at[:H, :H].set(
        params["w_hh"].T.astype(jnp.float32))
    b_p = jnp.zeros((1, H_pad), jnp.float32).at[:, :H].set(
        (params["b_ih"] + params["b_hh"])[None, :].astype(jnp.float32))
    w_fc_p = jnp.zeros((H_pad, O_pad), jnp.float32).at[:H, :O].set(
        params["w_fc"].T.astype(jnp.float32))
    b_fc_p = jnp.zeros((1, O_pad), jnp.float32).at[:, :O].set(
        params["b_fc"][None, :].astype(jnp.float32))

    out_pad = pl.pallas_call(
        _rnn_fused_kernel,
        out_shape=jax.ShapeDtypeStruct((B_pad, O_pad), jnp.float32),
        grid_spec=pltpu.PrefetchScalarGridSpec(
            num_scalar_prefetch=0,
            grid=(1,),                                 # whole forward in one invocation
            in_specs=[
                pl.BlockSpec((T * B_pad, 1), lambda i: (0, 0)),     # token ids
                pl.BlockSpec((V_pad, H_pad), lambda i: (0, 0)),     # emb @ W_ih^T
                pl.BlockSpec((H_pad, H_pad), lambda i: (0, 0)),     # W_hh^T
                pl.BlockSpec((1, H_pad), lambda i: (0, 0)),         # b_ih + b_hh
                pl.BlockSpec((H_pad, O_pad), lambda i: (0, 0)),     # W_fc^T
                pl.BlockSpec((1, O_pad), lambda i: (0, 0)),         # b_fc
            ],
            out_specs=pl.BlockSpec((B_pad, O_pad), lambda i: (0, 0)),
            scratch_shapes=[pltpu.VMEM((T, B_pad, H_pad), jnp.float32)],
        ),
        compiler_params=pltpu.CompilerParams(
            dimension_semantics=("arbitrary",)),
    )(tok_tm, emb_proj_p, w_hh_p, b_p, w_fc_p, b_fc_p)

    return out_pad[:B, :O]


def init_params(key, vocab_size, embedding_dim, hidden_dim, output_dim):
    ks = jax.random.split(key, 7)
    k_rnn = 1.0 / jnp.sqrt(hidden_dim)
    k_fc = 1.0 / jnp.sqrt(hidden_dim)
    emb = jax.random.normal(ks[0], (vocab_size, embedding_dim), jnp.float32)
    emb = emb.at[0].set(0.0)                           # padding_idx=0 -> zero row
    u = lambda k, shape, lim: jax.random.uniform(k, shape, jnp.float32, -lim, lim)
    return {
        "embedding": emb,
        "w_ih": u(ks[1], (hidden_dim, embedding_dim), k_rnn),
        "w_hh": u(ks[2], (hidden_dim, hidden_dim), k_rnn),
        "b_ih": u(ks[3], (hidden_dim,), k_rnn),
        "b_hh": u(ks[4], (hidden_dim,), k_rnn),
        "w_fc": u(ks[5], (output_dim, hidden_dim), k_fc),
        "b_fc": u(ks[6], (output_dim,), k_fc),
    }


if __name__ == "__main__":
    VOCAB, E, H, O = 50, 16, 32, 8
    B, T = 4, 8

    key = jax.random.PRNGKey(0)
    k_param, k_text = jax.random.split(key)
    params = init_params(k_param, VOCAB, E, H, O)
    text = jax.random.randint(k_text, (B, T), 0, VOCAB, dtype=jnp.int32)

    out = simple_rnn_with_embeddings(text, params)
    out = jax.block_until_ready(out)

    # Pure-JAX reference of the same forward, for a sanity check.
    def ref(text, p):
        x = jnp.take(p["embedding"], text, axis=0)          # (B, T, E)
        h = jnp.zeros((text.shape[0], H), jnp.float32)
        for t in range(text.shape[1]):
            h = jnp.tanh(x[:, t] @ p["w_ih"].T + p["b_ih"]
                         + h @ p["w_hh"].T + p["b_hh"])
        return h @ p["w_fc"].T + p["b_fc"]

    assert out.shape == (B, O)
    assert jnp.allclose(out, ref(text, params), atol=1e-5, rtol=1e-5)
    print("KERNEL_OK")
</pallas_src>

<mosaic_0001>
module attributes {stable_mosaic.version = 11 : i64} {
  func.func @_rnn_fused_kernel(%arg0: i32, %arg1: memref<64x1xi32, #tpu.memory_space<vmem>>, %arg2: memref<128x128xf32, #tpu.memory_space<vmem>>, %arg3: memref<128x128xf32, #tpu.memory_space<vmem>>, %arg4: memref<1x128xf32, #tpu.memory_space<vmem>>, %arg5: memref<128x128xf32, #tpu.memory_space<vmem>>, %arg6: memref<1x128xf32, #tpu.memory_space<vmem>>, %arg7: memref<8x128xf32, #tpu.memory_space<vmem>>, %arg8: memref<8x8x128xf32, #tpu.memory_space<vmem>>) attributes {dimension_semantics = [#tpu.dimension_semantics<arbitrary>], iteration_bounds = array<i64: 1>, scalar_prefetch = 0 : i64, scratch_operands = 1 : i64, tpu.core_type = #tpu.core_type<tc>, window_params = [{pipeline_mode = #tpu.pipeline_mode<synchronous>, transform_indices = @transform_0, window_bounds = array<i64: 64, 1>}, {pipeline_mode = #tpu.pipeline_mode<synchronous>, transform_indices = @transform_1, window_bounds = array<i64: 128, 128>}, {pipeline_mode = #tpu.pipeline_mode<synchronous>, transform_indices = @transform_2, window_bounds = array<i64: 128, 128>}, {pipeline_mode = #tpu.pipeline_mode<synchronous>, transform_indices = @transform_3, window_bounds = array<i64: 1, 128>}, {pipeline_mode = #tpu.pipeline_mode<synchronous>, transform_indices = @transform_4, window_bounds = array<i64: 128, 128>}, {pipeline_mode = #tpu.pipeline_mode<synchronous>, transform_indices = @transform_5, window_bounds = array<i64: 1, 128>}, {pipeline_mode = #tpu.pipeline_mode<synchronous>, transform_indices = @transform_6, window_bounds = array<i64: 8, 128>}]} {
    %c0 = arith.constant 0 : index
    %c0_0 = arith.constant 0 : index
    %0 = vector.load %arg1[%c0, %c0_0] : memref<64x1xi32, #tpu.memory_space<vmem>>, vector<64x1xi32>
    %1 = tpu.iota {dimensions = array<i32: 1>} : vector<64x128xi32>
    %2 = vector.broadcast %0 : vector<64x1xi32> to vector<64x128xi32>
    %3 = arith.cmpi eq, %1, %2 : vector<64x128xi32>
    %4 = arith.extui %3 : vector<64x128xi1> to vector<64x128xi32>
    %5 = arith.sitofp %4 : vector<64x128xi32> to vector<64x128xf32>
    %c0_1 = arith.constant 0 : index
    %c0_2 = arith.constant 0 : index
    %6 = vector.load %arg2[%c0_1, %c0_2] : memref<128x128xf32, #tpu.memory_space<vmem>>, vector<128x128xf32>
    %cst = arith.constant dense<0.000000e+00> : vector<64x128xf32>
    %7 = tpu.matmul %5, %6, %cst {dimension_numbers = #tpu.dot_dimension_numbers<[1], [0], [0], [1], [0, 0, 1, 1], [], []>} : vector<64x128xf32>, vector<128x128xf32>, vector<64x128xf32> -> vector<64x128xf32>
    %c0_3 = arith.constant 0 : index
    %c0_4 = arith.constant 0 : index
    %8 = vector.load %arg4[%c0_3, %c0_4] : memref<1x128xf32, #tpu.memory_space<vmem>>, vector<1x128xf32>
    %9 = vector.broadcast %8 : vector<1x128xf32> to vector<64x128xf32>
    %10 = arith.addf %7, %9 : vector<64x128xf32>
    %11 = vector.shape_cast %10 : vector<64x128xf32> to vector<8x8x128xf32>
    %c0_5 = arith.constant 0 : index
    %c0_6 = arith.constant 0 : index
    %c0_7 = arith.constant 0 : index
    %12 = vector.load %arg8[%c0_5, %c0_6, %c0_7] : memref<8x8x128xf32, #tpu.memory_space<vmem>>, vector<8x8x128xf32>
    tpu.vector_store %arg8[%c0_5, %c0_6, %c0_7], %11 {strides = array<i32>} : memref<8x8x128xf32, #tpu.memory_space<vmem>>, vector<8x8x128xf32>,
    %c0_8 = arith.constant 0 : index
    %c0_9 = arith.constant 0 : index
    %13 = vector.load %arg3[%c0_8, %c0_9] : memref<128x128xf32, #tpu.memory_space<vmem>>, vector<128x128xf32>
    %cst_10 = arith.constant 0.000000e+00 : f32
    %14 = vector.broadcast %cst_10 : f32 to vector<8x128xf32>
    %c0_i32 = arith.constant 0 : i32
    %15 = arith.index_cast %c0_i32 : i32 to index
    %c0_11 = arith.constant 0 : index
    %c0_12 = arith.constant 0 : index
    %16 = vector.load %arg8[%15, %c0_11, %c0_12] : memref<8x8x128xf32, #tpu.memory_space<vmem>>, vector<1x8x128xf32>
    %17 = vector.shape_cast %16 : vector<1x8x128xf32> to vector<8x128xf32>
    %cst_13 = arith.constant dense<0.000000e+00> : vector<8x128xf32>
    %18 = tpu.matmul %14, %13, %cst_13 {dimension_numbers = #tpu.dot_dimension_numbers<[1], [0], [0], [1], [0, 0, 1, 1], [], []>} : vector<8x128xf32>, vector<128x128xf32>, vector<8x128xf32> -> vector<8x128xf32>
    %19 = arith.addf %17, %18 : vector<8x128xf32>
    %20 = math.tanh %19 : vector<8x128xf32>
    %c1_i32 = arith.constant 1 : i32
    %21 = arith.index_cast %c1_i32 : i32 to index
    %c0_14 = arith.constant 0 : index
    %c0_15 = arith.constant 0 : index
    %22 = vector.load %arg8[%21, %c0_14, %c0_15] : memref<8x8x128xf32, #tpu.memory_space<vmem>>, vector<1x8x128xf32>
    %23 = vector.shape_cast %22 : vector<1x8x128xf32> to vector<8x128xf32>
    %cst_16 = arith.constant dense<0.000000e+00> : vector<8x128xf32>
    %24 = tpu.matmul %20, %13, %cst_16 {dimension_numbers = #tpu.dot_dimension_numbers<[1], [0], [0], [1], [0, 0, 1, 1], [], []>} : vector<8x128xf32>, vector<128x128xf32>, vector<8x128xf32> -> vector<8x128xf32>
    %25 = arith.addf %23, %24 : vector<8x128xf32>
    %26 = math.tanh %25 : vector<8x128xf32>
    %c2_i32 = arith.constant 2 : i32
    %27 = arith.index_cast %c2_i32 : i32 to index
    %c0_17 = arith.constant 0 : index
    %c0_18 = arith.constant 0 : index
    %28 = vector.load %arg8[%27, %c0_17, %c0_18] : memref<8x8x128xf32, #tpu.memory_space<vmem>>, vector<1x8x128xf32>
    %29 = vector.shape_cast %28 : vector<1x8x128xf32> to vector<8x128xf32>
    %cst_19 = arith.constant dense<0.000000e+00> : vector<8x128xf32>
    %30 = tpu.matmul %26, %13, %cst_19 {dimension_numbers = #tpu.dot_dimension_numbers<[1], [0], [0], [1], [0, 0, 1, 1], [], []>} : vector<8x128xf32>, vector<128x128xf32>, vector<8x128xf32> -> vector<8x128xf32>
    %31 = arith.addf %29, %30 : vector<8x128xf32>
    %32 = math.tanh %31 : vector<8x128xf32>
    %c3_i32 = arith.constant 3 : i32
    %33 = arith.index_cast %c3_i32 : i32 to index
    %c0_20 = arith.constant 0 : index
    %c0_21 = arith.constant 0 : index
    %34 = vector.load %arg8[%33, %c0_20, %c0_21] : memref<8x8x128xf32, #tpu.memory_space<vmem>>, vector<1x8x128xf32>
    %35 = vector.shape_cast %34 : vector<1x8x128xf32> to vector<8x128xf32>
    %cst_22 = arith.constant dense<0.000000e+00> : vector<8x128xf32>
    %36 = tpu.matmul %32, %13, %cst_22 {dimension_numbers = #tpu.dot_dimension_numbers<[1], [0], [0], [1], [0, 0, 1, 1], [], []>} : vector<8x128xf32>, vector<128x128xf32>, vector<8x128xf32> -> vector<8x128xf32>
    %37 = arith.addf %35, %36 : vector<8x128xf32>
    %38 = math.tanh %37 : vector<8x128xf32>
    %c4_i32 = arith.constant 4 : i32
    %39 = arith.index_cast %c4_i32 : i32 to index
    %c0_23 = arith.constant 0 : index
    %c0_24 = arith.constant 0 : index
    %40 = vector.load %arg8[%39, %c0_23, %c0_24] : memref<8x8x128xf32, #tpu.memory_space<vmem>>, vector<1x8x128xf32>
    %41 = vector.shape_cast %40 : vector<1x8x128xf32> to vector<8x128xf32>
    %cst_25 = arith.constant dense<0.000000e+00> : vector<8x128xf32>
    %42 = tpu.matmul %38, %13, %cst_25 {dimension_numbers = #tpu.dot_dimension_numbers<[1], [0], [0], [1], [0, 0, 1, 1], [], []>} : vector<8x128xf32>, vector<128x128xf32>, vector<8x128xf32> -> vector<8x128xf32>
    %43 = arith.addf %41, %42 : vector<8x128xf32>
    %44 = math.tanh %43 : vector<8x128xf32>
    %c5_i32 = arith.constant 5 : i32
    %45 = arith.index_cast %c5_i32 : i32 to index
    %c0_26 = arith.constant 0 : index
    %c0_27 = arith.constant 0 : index
    %46 = vector.load %arg8[%45, %c0_26, %c0_27] : memref<8x8x128xf32, #tpu.memory_space<vmem>>, vector<1x8x128xf32>
    %47 = vector.shape_cast %46 : vector<1x8x128xf32> to vector<8x128xf32>
    %cst_28 = arith.constant dense<0.000000e+00> : vector<8x128xf32>
    %48 = tpu.matmul %44, %13, %cst_28 {dimension_numbers = #tpu.dot_dimension_numbers<[1], [0], [0], [1], [0, 0, 1, 1], [], []>} : vector<8x128xf32>, vector<128x128xf32>, vector<8x128xf32> -> vector<8x128xf32>
    %49 = arith.addf %47, %48 : vector<8x128xf32>
    %50 = math.tanh %49 : vector<8x128xf32>
    %c6_i32 = arith.constant 6 : i32
    %51 = arith.index_cast %c6_i32 : i32 to index
    %c0_29 = arith.constant 0 : index
    %c0_30 = arith.constant 0 : index
    %52 = vector.load %arg8[%51, %c0_29, %c0_30] : memref<8x8x128xf32, #tpu.memory_space<vmem>>, vector<1x8x128xf32>
    %53 = vector.shape_cast %52 : vector<1x8x128xf32> to vector<8x128xf32>
    %cst_31 = arith.constant dense<0.000000e+00> : vector<8x128xf32>
    %54 = tpu.matmul %50, %13, %cst_31 {dimension_numbers = #tpu.dot_dimension_numbers<[1], [0], [0], [1], [0, 0, 1, 1], [], []>} : vector<8x128xf32>, vector<128x128xf32>, vector<8x128xf32> -> vector<8x128xf32>
    %55 = arith.addf %53, %54 : vector<8x128xf32>
    %56 = math.tanh %55 : vector<8x128xf32>
    %c7_i32 = arith.constant 7 : i32
    %57 = arith.index_cast %c7_i32 : i32 to index
    %c0_32 = arith.constant 0 : index
    %c0_33 = arith.constant 0 : index
    %58 = vector.load %arg8[%57, %c0_32, %c0_33] : memref<8x8x128xf32, #tpu.memory_space<vmem>>, vector<1x8x128xf32>
    %59 = vector.shape_cast %58 : vector<1x8x128xf32> to vector<8x128xf32>
    %cst_34 = arith.constant dense<0.000000e+00> : vector<8x128xf32>
    %60 = tpu.matmul %56, %13, %cst_34 {dimension_numbers = #tpu.dot_dimension_numbers<[1], [0], [0], [1], [0, 0, 1, 1], [], []>} : vector<8x128xf32>, vector<128x128xf32>, vector<8x128xf32> -> vector<8x128xf32>
    %61 = arith.addf %59, %60 : vector<8x128xf32>
    %62 = math.tanh %61 : vector<8x128xf32>
    %c8_i32 = arith.constant 8 : i32
    %c0_35 = arith.constant 0 : index
    %c0_36 = arith.constant 0 : index
    %63 = vector.load %arg5[%c0_35, %c0_36] : memref<128x128xf32, #tpu.memory_space<vmem>>, vector<128x128xf32>
    %cst_37 = arith.constant dense<0.000000e+00> : vector<8x128xf32>
    %64 = tpu.matmul %62, %63, %cst_37 {dimension_numbers = #tpu.dot_dimension_numbers<[1], [0], [0], [1], [0, 0, 1, 1], [], []>} : vector<8x128xf32>, vector<128x128xf32>, vector<8x128xf32> -> vector<8x128xf32>
    %c0_38 = arith.constant 0 : index
    %c0_39 = arith.constant 0 : index
    %65 = vector.load %arg6[%c0_38, %c0_39] : memref<1x128xf32, #tpu.memory_space<vmem>>, vector<1x128xf32>
    %66 = vector.broadcast %65 : vector<1x128xf32> to vector<8x128xf32>
    %67 = arith.addf %64, %66 : vector<8x128xf32>
    %c0_40 = arith.constant 0 : index
    %c0_41 = arith.constant 0 : index
    %68 = vector.load %arg7[%c0_40, %c0_41] : memref<8x128xf32, #tpu.memory_space<vmem>>, vector<8x128xf32>
    tpu.vector_store %arg7[%c0_40, %c0_41], %67 {strides = array<i32>} : memref<8x128xf32, #tpu.memory_space<vmem>>, vector<8x128xf32>,
    return
  }
  func.func @transform_0(%arg0: i32) -> (i32, i32) {
    %c0_i32 = arith.constant 0 : i32
    %c0_i32_0 = arith.constant 0 : i32
    %c0_i32_1 = arith.constant 0 : i32
    return %c0_i32, %c0_i32_0 : i32, i32
  }
  func.func @transform_1(%arg0: i32) -> (i32, i32) {
    %c0_i32 = arith.constant 0 : i32
    %c0_i32_0 = arith.constant 0 : i32
    %c0_i32_1 = arith.constant 0 : i32
    return %c0_i32, %c0_i32_0 : i32, i32
  }
  func.func @transform_2(%arg0: i32) -> (i32, i32) {
    %c0_i32 = arith.constant 0 : i32
    %c0_i32_0 = arith.constant 0 : i32
    %c0_i32_1 = arith.constant 0 : i32
    return %c0_i32, %c0_i32_0 : i32, i32
  }
  func.func @transform_3(%arg0: i32) -> (i32, i32) {
    %c0_i32 = arith.constant 0 : i32
    %c0_i32_0 = arith.constant 0 : i32
    %c0_i32_1 = arith.constant 0 : i32
    return %c0_i32, %c0_i32_0 : i32, i32
  }
  func.func @transform_4(%arg0: i32) -> (i32, i32) {
    %c0_i32 = arith.constant 0 : i32
    %c0_i32_0 = arith.constant 0 : i32
    %c0_i32_1 = arith.constant 0 : i32
    return %c0_i32, %c0_i32_0 : i32, i32
  }
  func.func @transform_5(%arg0: i32) -> (i32, i32) {
    %c0_i32 = arith.constant 0 : i32
    %c0_i32_0 = arith.constant 0 : i32
    %c0_i32_1 = arith.constant 0 : i32
    return %c0_i32, %c0_i32_0 : i32, i32
  }
  func.func @transform_6(%arg0: i32) -> (i32, i32) {
    %c0_i32 = arith.constant 0 : i32
    %c0_i32_0 = arith.constant 0 : i32
    %c0_i32_1 = arith.constant 0 : i32
    return %c0_i32, %c0_i32_0 : i32, i32
  }
}

</mosaic_0001>

<llo_original>
// kernel: simple_rnn_with_embeddings.1
$region0: #{simple_rnn_with_embeddings.1}
  #allocation0 [shape = 'u32[]', space=smem, size = 0x4, offset = 0x4, fixed_abs, tag = 'smem constant byte address 0x4 - core index']
  #allocation1 [shape = 'u32[144,128]{1,0:T(1,128)}', space=vmem, size = 0x12000, scoped, tag = 'internal scratch']
  #allocation2 [shape = 'f32[8,8,128]{2,1,0:T(8,128)}', space=vmem, size = 0x8000, scoped, tag = 'scratch operand']
  %s0 = inlined_call_operand.vmem [shape: s32[64,1], index: 0, kind: input, shape index: {}]
  %s1 = inlined_call_operand.vmem [shape: f32[128,128], index: 1, kind: input, shape index: {}]
  %s2 = inlined_call_operand.vmem [shape: f32[128,128], index: 2, kind: input, shape index: {}]
  %s3 = inlined_call_operand.vmem [shape: f32[1,128], index: 3, kind: input, shape index: {}]
  %s4 = inlined_call_operand.vmem [shape: f32[128,128], index: 4, kind: input, shape index: {}]
  %s5 = inlined_call_operand.vmem [shape: f32[1,128], index: 5, kind: input, shape index: {}]
  %s6 = inlined_call_operand.vmem [shape: f32[8,128], index: 6, kind: output, shape index: {}]
  %s7 = sld [smem:[#allocation0]]
  $region34: #{simple_rnn_with_embeddings.1} parent=0
    _
  %s9 = ssub.s32 1, %s7
  %s10 = scalar_select 0, %s9, %s7
  // Predicated region
  $region2: #{simple_rnn_with_embeddings.1} parent=0 // pred_check
    _
  $region3: #{simple_rnn_with_embeddings.1} parent=0 // pred_check_branch
    %12 = sbr.rel (0) target = $region5
  $region4: #{simple_rnn_with_embeddings.1} parent=0 // pred_region
    _
  $region5: #{simple_rnn_with_embeddings.1} parent=0 // pred_fallthru
    _
  // Predicated region
  $region6: #{simple_rnn_with_embeddings.1} parent=0 // pred_check
    _
  $region7: #{simple_rnn_with_embeddings.1} parent=0 // pred_check_branch
    %14 = sbr.rel (0) target = $region9
  $region8: #{simple_rnn_with_embeddings.1} parent=0 // pred_region
    _
  $region9: #{simple_rnn_with_embeddings.1} parent=0 // pred_fallthru
    _
  // Predicated region
  $region10: #{simple_rnn_with_embeddings.1} parent=0 // pred_check
    _
  $region11: #{simple_rnn_with_embeddings.1} parent=0 // pred_check_branch
    %16 = sbr.rel (0) target = $region13
  $region12: #{simple_rnn_with_embeddings.1} parent=0 // pred_region
    _
  $region13: #{simple_rnn_with_embeddings.1} parent=0 // pred_fallthru
    _
  // Predicated region
  $region14: #{simple_rnn_with_embeddings.1} parent=0 // pred_check
    _
  $region15: #{simple_rnn_with_embeddings.1} parent=0 // pred_check_branch
    %18 = sbr.rel (0) target = $region17
  $region16: #{simple_rnn_with_embeddings.1} parent=0 // pred_region
    _
  $region17: #{simple_rnn_with_embeddings.1} parent=0 // pred_fallthru
    _
  // Predicated region
  $region18: #{simple_rnn_with_embeddings.1} parent=0 // pred_check
    _
  $region19: #{simple_rnn_with_embeddings.1} parent=0 // pred_check_branch
    %20 = sbr.rel (0) target = $region21
  $region20: #{simple_rnn_with_embeddings.1} parent=0 // pred_region
    _
  $region21: #{simple_rnn_with_embeddings.1} parent=0 // pred_fallthru
    _
  // Predicated region
  $region22: #{simple_rnn_with_embeddings.1} parent=0 // pred_check
    _
  $region23: #{simple_rnn_with_embeddings.1} parent=0 // pred_check_branch
    %22 = sbr.rel (0) target = $region25
  $region24: #{simple_rnn_with_embeddings.1} parent=0 // pred_region
    _
  $region25: #{simple_rnn_with_embeddings.1} parent=0 // pred_fallthru
    _
  %v23 = vld [vmem:[%s0] sm:$0xff]
  %v24 = vld [vmem:[%s0 + $0x8] sm:$0xff]
  %v25 = vld [vmem:[%s0 + $0x10] sm:$0xff]
  %v26 = vld [vmem:[%s0 + $0x18] sm:$0xff]
  %v27 = vld [vmem:[%s0 + $0x20] sm:$0xff]
  %v28 = vld [vmem:[%s0 + $0x28] sm:$0xff]
  %v29 = vld [vmem:[%s0 + $0x30] sm:$0xff]
  %v30 = vld [vmem:[%s0 + $0x38] sm:$0xff]
  %v31 = vlaneseq
  %v32 = vand.u32 %v31, 127
  %33 = vset.pattern.permute.xlu0 0
  %34 = vperm.xlu0 %33, %v23
  %v35 = vpop.permute.xlu0 %34
  %36 = vset.pattern.permute.xlu0 0
  %37 = vperm.xlu0 %36, %v24
  %v38 = vpop.permute.xlu0 %37
  %39 = vset.pattern.permute.xlu0 0
  %40 = vperm.xlu0 %39, %v25
  %v41 = vpop.permute.xlu0 %40
  %42 = vset.pattern.permute.xlu0 0
  %43 = vperm.xlu0 %42, %v26
  %v44 = vpop.permute.xlu0 %43
  %45 = vset.pattern.permute.xlu0 0
  %46 = vperm.xlu0 %45, %v27
  %v47 = vpop.permute.xlu0 %46
  %48 = vset.pattern.permute.xlu0 0
  %49 = vperm.xlu0 %48, %v28
  %v50 = vpop.permute.xlu0 %49
  %51 = vset.pattern.permute.xlu0 0
  %52 = vperm.xlu0 %51, %v29
  %v53 = vpop.permute.xlu0 %52
  %54 = vset.pattern.permute.xlu0 0
  %55 = vperm.xlu0 %54, %v30
  %v56 = vpop.permute.xlu0 %55
  %vm57 = vcmp.eq.s32.totalorder %v32, %v35
  %vm58 = vcmp.eq.s32.totalorder %v32, %v38
  %vm59 = vcmp.eq.s32.totalorder %v32, %v41
  %vm60 = vcmp.eq.s32.totalorder %v32, %v44
  %vm61 = vcmp.eq.s32.totalorder %v32, %v47
  %vm62 = vcmp.eq.s32.totalorder %v32, %v50
  %vm63 = vcmp.eq.s32.totalorder %v32, %v53
  %vm64 = vcmp.eq.s32.totalorder %v32, %v56
  %v65 = vsel %vm57, 1, 0
  %v66 = vsel %vm58, 1, 0
  %v67 = vsel %vm59, 1, 0
  %v68 = vsel %vm60, 1, 0
  %v69 = vsel %vm61, 1, 0
  %v70 = vsel %vm62, 1, 0
  %v71 = vsel %vm63, 1, 0
  %v72 = vsel %vm64, 1, 0
  %v73 = vcvt.s32.f32 %v65
  %v74 = vcvt.s32.f32 %v66
  %v75 = vcvt.s32.f32 %v67
  %v76 = vcvt.s32.f32 %v68
  %v77 = vcvt.s32.f32 %v69
  %v78 = vcvt.s32.f32 %v70
  %v79 = vcvt.s32.f32 %v71
  %v80 = vcvt.s32.f32 %v72
  %v81 = vld [vmem:[%s1] sm:$0xff]
  %v82 = vld [vmem:[%s1 + $0x8] sm:$0xff]
  %v83 = vld [vmem:[%s1 + $0x10] sm:$0xff]
  %v84 = vld [vmem:[%s1 + $0x18] sm:$0xff]
  %v85 = vld [vmem:[%s1 + $0x20] sm:$0xff]
  %v86 = vld [vmem:[%s1 + $0x28] sm:$0xff]
  %v87 = vld [vmem:[%s1 + $0x30] sm:$0xff]
  %v88 = vld [vmem:[%s1 + $0x38] sm:$0xff]
  %v89 = vld [vmem:[%s1 + $0x40] sm:$0xff]
  %v90 = vld [vmem:[%s1 + $0x48] sm:$0xff]
  %v91 = vld [vmem:[%s1 + $0x50] sm:$0xff]
  %v92 = vld [vmem:[%s1 + $0x58] sm:$0xff]
  %v93 = vld [vmem:[%s1 + $0x60] sm:$0xff]
  %v94 = vld [vmem:[%s1 + $0x68] sm:$0xff]
  %v95 = vld [vmem:[%s1 + $0x70] sm:$0xff]
  %v96 = vld [vmem:[%s1 + $0x78] sm:$0xff]
  %v97 = vld [vmem:[%s3] sm:$0x1]
  %v99 = vlaneseq
  %v100 = vshrl.u32 %v99, 7
  %v101 = vsub.s32 0, %v100
  %v102 = vrot.slane %v97, %v101
  %104 = vmatprep.subr.mxu0 0.0
  %105 = vmatpush1.msra.mxu0 %v81
  %106 = vmatprep.subr.mxu0 0.0
  %107 = vmatpush1.msra.mxu0 %v82
  %108 = vmatprep.subr.mxu0 0.0
  %109 = vmatpush1.msra.mxu0 %v83
  %110 = vmatprep.subr.mxu0 0.0
  %111 = vmatpush1.msra.mxu0 %v84
  %112 = vmatprep.subr.mxu0 0.0
  %113 = vmatpush1.msra.mxu0 %v85
  %114 = vmatprep.subr.mxu0 0.0
  %115 = vmatpush1.msra.mxu0 %v86
  %116 = vmatprep.subr.mxu0 0.0
  %117 = vmatpush1.msra.mxu0 %v87
  %118 = vmatprep.subr.mxu0 0.0
  %119 = vmatpush1.msra.mxu0 %v88
  %120 = vmatprep.subr.mxu0 0.0
  %121 = vmatpush1.msra.mxu0 %v89
  %122 = vmatprep.subr.mxu0 0.0
  %123 = vmatpush1.msra.mxu0 %v90
  %124 = vmatprep.subr.mxu0 0.0
  %125 = vmatpush1.msra.mxu0 %v91
  %126 = vmatprep.subr.mxu0 0.0
  %127 = vmatpush1.msra.mxu0 %v92
  %128 = vmatprep.subr.mxu0 0.0
  %129 = vmatpush1.msra.mxu0 %v93
  %130 = vmatprep.subr.mxu0 0.0
  %131 = vmatpush1.msra.mxu0 %v94
  %132 = vmatprep.subr.mxu0 0.0
  %133 = vmatpush1.msra.mxu0 %v95
  %134 = vmatprep.subr.mxu0 0.0
  %135 = vmatpush1.msra.mxu0 %v96
  %136 = vmatprep.subr.mxu0 0.0
  %137 = vmatpush1.msra.mxu0 0.0
  %138 = vmatprep.subr.mxu0 0.0
  %139 = vmatpush1.msra.mxu0 0.0
  %140 = vmatprep.subr.mxu0 0.0
  %141 = vmatpush1.msra.mxu0 0.0
  %142 = vmatprep.subr.mxu0 0.0
  %143 = vmatpush1.msra.mxu0 0.0
  %144 = vmatprep.subr.mxu0 0.0
  %145 = vmatpush1.msra.mxu0 0.0
  %146 = vmatprep.subr.mxu0 0.0
  %147 = vmatpush1.msra.mxu0 0.0
  %148 = vmatprep.subr.mxu0 0.0
  %149 = vmatpush1.msra.mxu0 0.0
  %150 = vmatprep.subr.mxu0 0.0
  %151 = vmatpush1.msra.mxu0 0.0
  %152 = vmatprep.subr.mxu0 0.0
  %153 = vmatpush1.msra.mxu0 0.0
  %154 = vmatprep.subr.mxu0 0.0
  %155 = vmatpush1.msra.mxu0 0.0
  %156 = vmatprep.subr.mxu0 0.0
  %157 = vmatpush1.msra.mxu0 0.0
  %158 = vmatprep.subr.mxu0 0.0
  %159 = vmatpush1.msra.mxu0 0.0
  %160 = vmatprep.subr.mxu0 0.0
  %161 = vmatpush1.msra.mxu0 0.0
  %162 = vmatprep.subr.mxu0 0.0
  %163 = vmatpush1.msra.mxu0 0.0
  %164 = vmatprep.subr.mxu0 0.0
  %165 = vmatpush1.msra.mxu0 0.0
  %166 = vmatprep.subr.mxu0 0.0
  %167 = vmatpush1.msra.mxu0 0.0
  %168 = vmatprep.mubr.f32.mxu0 0.0
  %169 = vmatmul.mubr.f32.gmra.mrb[0].mxu0 %v73
  %v170 = vpop.f32.mrb[0].mxu0
  %v171 = vadd.f32 %v102, %v170
  %v172 = vpop.f32.mrb[0].mxu0
  %173 = vmatprep.mubr.f32.mxu0 0.0
  %174 = vmatmul.mubr.f32.gmra.mrb[0].mxu0 %v74
  %v175 = vpop.f32.mrb[0].mxu0
  %v176 = vadd.f32 %v102, %v175
  %v177 = vpop.f32.mrb[0].mxu0
  %178 = vmatprep.mubr.f32.mxu0 0.0
  %179 = vmatmul.mubr.f32.gmra.mrb[0].mxu0 %v75
  %v180 = vpop.f32.mrb[0].mxu0
  %v181 = vadd.f32 %v102, %v180
  %v182 = vpop.f32.mrb[0].mxu0
  %183 = vmatprep.mubr.f32.mxu0 0.0
  %184 = vmatmul.mubr.f32.gmra.mrb[0].mxu0 %v76
  %v185 = vpop.f32.mrb[0].mxu0
  %v186 = vadd.f32 %v102, %v185
  %v187 = vpop.f32.mrb[0].mxu0
  %188 = vmatprep.mubr.f32.mxu0 0.0
  %189 = vmatmul.mubr.f32.gmra.mrb[0].mxu0 %v77
  %v190 = vpop.f32.mrb[0].mxu0
  %v191 = vadd.f32 %v102, %v190
  %v192 = vpop.f32.mrb[0].mxu0
  %193 = vmatprep.mubr.f32.mxu0 0.0
  %194 = vmatmul.mubr.f32.gmra.mrb[0].mxu0 %v78
  %v195 = vpop.f32.mrb[0].mxu0
  %v196 = vadd.f32 %v102, %v195
  %v197 = vpop.f32.mrb[0].mxu0
  %198 = vmatprep.mubr.f32.mxu0 0.0
  %199 = vmatmul.mubr.f32.gmra.mrb[0].mxu0 %v79
  %v200 = vpop.f32.mrb[0].mxu0
  %v201 = vadd.f32 %v102, %v200
  %v202 = vpop.f32.mrb[0].mxu0
  %203 = vmatprep.mubr.f32.mxu0 0.0
  %204 = vmatmul.mubr.f32.gmra.mrb[0].mxu0 %v80
  %v205 = vpop.f32.mrb[0].mxu0
  %v206 = vadd.f32 %v102, %v205
  %v207 = vpop.f32.mrb[0].mxu0
  %208 = vdwg.mxu0
  %209 = vst [vmem:[#allocation2] sm:$0xff] %v171
  %210 = vst [vmem:[#allocation2 + $0x8] sm:$0xff] %v176
  %211 = vst [vmem:[#allocation2 + $0x10] sm:$0xff] %v181
  %212 = vst [vmem:[#allocation2 + $0x18] sm:$0xff] %v186
  %213 = vst [vmem:[#allocation2 + $0x20] sm:$0xff] %v191
  %214 = vst [vmem:[#allocation2 + $0x28] sm:$0xff] %v196
  %215 = vst [vmem:[#allocation2 + $0x30] sm:$0xff] %v201
  %216 = vst [vmem:[#allocation2 + $0x38] sm:$0xff] %v206
  %v217 = vld [vmem:[%s2] sm:$0xff]
  %v218 = vld [vmem:[%s2 + $0x8] sm:$0xff]
  %v219 = vld [vmem:[%s2 + $0x10] sm:$0xff]
  %v220 = vld [vmem:[%s2 + $0x18] sm:$0xff]
  %v221 = vld [vmem:[%s2 + $0x20] sm:$0xff]
  %v222 = vld [vmem:[%s2 + $0x28] sm:$0xff]
  %v223 = vld [vmem:[%s2 + $0x30] sm:$0xff]
  %v224 = vld [vmem:[%s2 + $0x38] sm:$0xff]
  %v225 = vld [vmem:[%s2 + $0x40] sm:$0xff]
  %v226 = vld [vmem:[%s2 + $0x48] sm:$0xff]
  %v227 = vld [vmem:[%s2 + $0x50] sm:$0xff]
  %v228 = vld [vmem:[%s2 + $0x58] sm:$0xff]
  %v229 = vld [vmem:[%s2 + $0x60] sm:$0xff]
  %v230 = vld [vmem:[%s2 + $0x68] sm:$0xff]
  %v231 = vld [vmem:[%s2 + $0x70] sm:$0xff]
  %v232 = vld [vmem:[%s2 + $0x78] sm:$0xff]
  %v233 = vld [vmem:[#allocation2] sm:$0xff]
  %234 = vmatprep.subr.mxu0 0.0
  %235 = vmatpush1.msra.mxu0 %v217
  %236 = vmatprep.subr.mxu0 0.0
  %237 = vmatpush1.msra.mxu0 %v218
  %238 = vmatprep.subr.mxu0 0.0
  %239 = vmatpush1.msra.mxu0 %v219
  %240 = vmatprep.subr.mxu0 0.0
  %241 = vmatpush1.msra.mxu0 %v220
  %242 = vmatprep.subr.mxu0 0.0
  %243 = vmatpush1.msra.mxu0 %v221
  %244 = vmatprep.subr.mxu0 0.0
  %245 = vmatpush1.msra.mxu0 %v222
  %246 = vmatprep.subr.mxu0 0.0
  %247 = vmatpush1.msra.mxu0 %v223
  %248 = vmatprep.subr.mxu0 0.0
  %249 = vmatpush1.msra.mxu0 %v224
  %250 = vmatprep.subr.mxu0 0.0
  %251 = vmatpush1.msra.mxu0 %v225
  %252 = vmatprep.subr.mxu0 0.0
  %253 = vmatpush1.msra.mxu0 %v226
  %254 = vmatprep.subr.mxu0 0.0
  %255 = vmatpush1.msra.mxu0 %v227
  %256 = vmatprep.subr.mxu0 0.0
  %257 = vmatpush1.msra.mxu0 %v228
  %258 = vmatprep.subr.mxu0 0.0
  %259 = vmatpush1.msra.mxu0 %v229
  %260 = vmatprep.subr.mxu0 0.0
  %261 = vmatpush1.msra.mxu0 %v230
  %262 = vmatprep.subr.mxu0 0.0
  %263 = vmatpush1.msra.mxu0 %v231
  %264 = vmatprep.subr.mxu0 0.0
  %265 = vmatpush1.msra.mxu0 %v232
  %266 = vmatprep.subr.mxu0 0.0
  %267 = vmatpush1.msra.mxu0 0.0
  %268 = vmatprep.subr.mxu0 0.0
  %269 = vmatpush1.msra.mxu0 0.0
  %270 = vmatprep.subr.mxu0 0.0
  %271 = vmatpush1.msra.mxu0 0.0
  %272 = vmatprep.subr.mxu0 0.0
  %273 = vmatpush1.msra.mxu0 0.0
  %274 = vmatprep.subr.mxu0 0.0
  %275 = vmatpush1.msra.mxu0 0.0
  %276 = vmatprep.subr.mxu0 0.0
  %277 = vmatpush1.msra.mxu0 0.0
  %278 = vmatprep.subr.mxu0 0.0
  %279 = vmatpush1.msra.mxu0 0.0
  %280 = vmatprep.subr.mxu0 0.0
  %281 = vmatpush1.msra.mxu0 0.0
  %282 = vmatprep.subr.mxu0 0.0
  %283 = vmatpush1.msra.mxu0 0.0
  %284 = vmatprep.subr.mxu0 0.0
  %285 = vmatpush1.msra.mxu0 0.0
  %286 = vmatprep.subr.mxu0 0.0
  %287 = vmatpush1.msra.mxu0 0.0
  %288 = vmatprep.subr.mxu0 0.0
  %289 = vmatpush1.msra.mxu0 0.0
  %290 = vmatprep.subr.mxu0 0.0
  %291 = vmatpush1.msra.mxu0 0.0
  %292 = vmatprep.subr.mxu0 0.0
  %293 = vmatpush1.msra.mxu0 0.0
  %294 = vmatprep.subr.mxu0 0.0
  %295 = vmatpush1.msra.mxu0 0.0
  %296 = vmatprep.subr.mxu0 0.0
  %297 = vmatpush1.msra.mxu0 0.0
  %298 = vmatprep.mubr.f32.mxu0 0.0
  %299 = vmatmul.mubr.f32.gmra.mrb[0].mxu0 0.0
  %v300 = vpop.f32.mrb[0].mxu0
  %v301 = vadd.f32 0.0, %v300
  %v302 = vpop.f32.mrb[0].mxu0
  %303 = vdwg.mxu0
  %v304 = vadd.f32 %v233, %v301
  %v305 = vtanh.pop %v304
  %s306 = scalar_lea.vmem [#allocation2], 8
  %v307 = vld [vmem:[%s306] sm:$0xff]
  %308 = vmatprep.subr.mxu0 0.0
  %309 = vmatpush1.msra.mxu0 %v217
  %310 = vmatprep.subr.mxu0 0.0
  %311 = vmatpush1.msra.mxu0 %v218
  %312 = vmatprep.subr.mxu0 0.0
  %313 = vmatpush1.msra.mxu0 %v219
  %314 = vmatprep.subr.mxu0 0.0
  %315 = vmatpush1.msra.mxu0 %v220
  %316 = vmatprep.subr.mxu0 0.0
  %317 = vmatpush1.msra.mxu0 %v221
  %318 = vmatprep.subr.mxu0 0.0
  %319 = vmatpush1.msra.mxu0 %v222
  %320 = vmatprep.subr.mxu0 0.0
  %321 = vmatpush1.msra.mxu0 %v223
  %322 = vmatprep.subr.mxu0 0.0
  %323 = vmatpush1.msra.mxu0 %v224
  %324 = vmatprep.subr.mxu0 0.0
  %325 = vmatpush1.msra.mxu0 %v225
  %326 = vmatprep.subr.mxu0 0.0
  %327 = vmatpush1.msra.mxu0 %v226
  %328 = vmatprep.subr.mxu0 0.0
  %329 = vmatpush1.msra.mxu0 %v227
  %330 = vmatprep.subr.mxu0 0.0
  %331 = vmatpush1.msra.mxu0 %v228
  %332 = vmatprep.subr.mxu0 0.0
  %333 = vmatpush1.msra.mxu0 %v229
  %334 = vmatprep.subr.mxu0 0.0
  %335 = vmatpush1.msra.mxu0 %v230
  %336 = vmatprep.subr.mxu0 0.0
  %337 = vmatpush1.msra.mxu0 %v231
  %338 = vmatprep.subr.mxu0 0.0
  %339 = vmatpush1.msra.mxu0 %v232
  %340 = vmatprep.subr.mxu0 0.0
  %341 = vmatpush1.msra.mxu0 0.0
  %342 = vmatprep.subr.mxu0 0.0
  %343 = vmatpush1.msra.mxu0 0.0
  %344 = vmatprep.subr.mxu0 0.0
  %345 = vmatpush1.msra.mxu0 0.0
  %346 = vmatprep.subr.mxu0 0.0
  %347 = vmatpush1.msra.mxu0 0.0
  %348 = vmatprep.subr.mxu0 0.0
  %349 = vmatpush1.msra.mxu0 0.0
  %350 = vmatprep.subr.mxu0 0.0
  %351 = vmatpush1.msra.mxu0 0.0
  %352 = vmatprep.subr.mxu0 0.0
  %353 = vmatpush1.msra.mxu0 0.0
  %354 = vmatprep.subr.mxu0 0.0
  %355 = vmatpush1.msra.mxu0 0.0
  %356 = vmatprep.subr.mxu0 0.0
  %357 = vmatpush1.msra.mxu0 0.0
  %358 = vmatprep.subr.mxu0 0.0
  %359 = vmatpush1.msra.mxu0 0.0
  %360 = vmatprep.subr.mxu0 0.0
  %361 = vmatpush1.msra.mxu0 0.0
  %362 = vmatprep.subr.mxu0 0.0
  %363 = vmatpush1.msra.mxu0 0.0
  %364 = vmatprep.subr.mxu0 0.0
  %365 = vmatpush1.msra.mxu0 0.0
  %366 = vmatprep.subr.mxu0 0.0
  %367 = vmatpush1.msra.mxu0 0.0
  %368 = vmatprep.subr.mxu0 0.0
  %369 = vmatpush1.msra.mxu0 0.0
  %370 = vmatprep.subr.mxu0 0.0
  %371 = vmatpush1.msra.mxu0 0.0
  %372 = vmatprep.mubr.f32.mxu0 0.0
  %373 = vmatmul.mubr.f32.gmra.mrb[0].mxu0 %v305
  %v374 = vpop.f32.mrb[0].mxu0
  %v375 = vadd.f32 0.0, %v374
  %v376 = vpop.f32.mrb[0].mxu0
  %377 = vdwg.mxu0
  %v378 = vadd.f32 %v307, %v375
  %v379 = vtanh.pop %v378
  %s380 = scalar_lea.vmem [#allocation2], 16
  %v381 = vld [vmem:[%s380] sm:$0xff]
  %382 = vmatprep.subr.mxu0 0.0
  %383 = vmatpush1.msra.mxu0 %v217
  %384 = vmatprep.subr.mxu0 0.0
  %385 = vmatpush1.msra.mxu0 %v218
  %386 = vmatprep.subr.mxu0 0.0
  %387 = vmatpush1.msra.mxu0 %v219
  %388 = vmatprep.subr.mxu0 0.0
  %389 = vmatpush1.msra.mxu0 %v220
  %390 = vmatprep.subr.mxu0 0.0
  %391 = vmatpush1.msra.mxu0 %v221
  %392 = vmatprep.subr.mxu0 0.0
  %393 = vmatpush1.msra.mxu0 %v222
  %394 = vmatprep.subr.mxu0 0.0
  %395 = vmatpush1.msra.mxu0 %v223
  %396 = vmatprep.subr.mxu0 0.0
  %397 = vmatpush1.msra.mxu0 %v224
  %398 = vmatprep.subr.mxu0 0.0
  %399 = vmatpush1.msra.mxu0 %v225
  %400 = vmatprep.subr.mxu0 0.0
  %401 = vmatpush1.msra.mxu0 %v226
  %402 = vmatprep.subr.mxu0 0.0
  %403 = vmatpush1.msra.mxu0 %v227
  %404 = vmatprep.subr.mxu0 0.0
  %405 = vmatpush1.msra.mxu0 %v228
  %406 = vmatprep.subr.mxu0 0.0
  %407 = vmatpush1.msra.mxu0 %v229
  %408 = vmatprep.subr.mxu0 0.0
  %409 = vmatpush1.msra.mxu0 %v230
  %410 = vmatprep.subr.mxu0 0.0
  %411 = vmatpush1.msra.mxu0 %v231
  %412 = vmatprep.subr.mxu0 0.0
  %413 = vmatpush1.msra.mxu0 %v232
  %414 = vmatprep.subr.mxu0 0.0
  %415 = vmatpush1.msra.mxu0 0.0
  %416 = vmatprep.subr.mxu0 0.0
  %417 = vmatpush1.msra.mxu0 0.0
  %418 = vmatprep.subr.mxu0 0.0
  %419 = vmatpush1.msra.mxu0 0.0
  %420 = vmatprep.subr.mxu0 0.0
  %421 = vmatpush1.msra.mxu0 0.0
  %422 = vmatprep.subr.mxu0 0.0
  %423 = vmatpush1.msra.mxu0 0.0
  %424 = vmatprep.subr.mxu0 0.0
  %425 = vmatpush1.msra.mxu0 0.0
  %426 = vmatprep.subr.mxu0 0.0
  %427 = vmatpush1.msra.mxu0 0.0
  %428 = vmatprep.subr.mxu0 0.0
  %429 = vmatpush1.msra.mxu0 0.0
  %430 = vmatprep.subr.mxu0 0.0
  %431 = vmatpush1.msra.mxu0 0.0
  %432 = vmatprep.subr.mxu0 0.0
  %433 = vmatpush1.msra.mxu0 0.0
  %434 = vmatprep.subr.mxu0 0.0
  %435 = vmatpush1.msra.mxu0 0.0
  %436 = vmatprep.subr.mxu0 0.0
  %437 = vmatpush1.msra.mxu0 0.0
  %438 = vmatprep.subr.mxu0 0.0
  %439 = vmatpush1.msra.mxu0 0.0
  %440 = vmatprep.subr.mxu0 0.0
  %441 = vmatpush1.msra.mxu0 0.0
  %442 = vmatprep.subr.mxu0 0.0
  %443 = vmatpush1.msra.mxu0 0.0
  %444 = vmatprep.subr.mxu0 0.0
  %445 = vmatpush1.msra.mxu0 0.0
  %446 = vmatprep.mubr.f32.mxu0 0.0
  %447 = vmatmul.mubr.f32.gmra.mrb[0].mxu0 %v379
  %v448 = vpop.f32.mrb[0].mxu0
  %v449 = vadd.f32 0.0, %v448
  %v450 = vpop.f32.mrb[0].mxu0
  %451 = vdwg.mxu0
  %v452 = vadd.f32 %v381, %v449
  %v453 = vtanh.pop %v452
  %s454 = scalar_lea.vmem [#allocation2], 24
  %v455 = vld [vmem:[%s454] sm:$0xff]
  %456 = vmatprep.subr.mxu0 0.0
  %457 = vmatpush1.msra.mxu0 %v217
  %458 = vmatprep.subr.mxu0 0.0
  %459 = vmatpush1.msra.mxu0 %v218
  %460 = vmatprep.subr.mxu0 0.0
  %461 = vmatpush1.msra.mxu0 %v219
  %462 = vmatprep.subr.mxu0 0.0
  %463 = vmatpush1.msra.mxu0 %v220
  %464 = vmatprep.subr.mxu0 0.0
  %465 = vmatpush1.msra.mxu0 %v221
  %466 = vmatprep.subr.mxu0 0.0
  %467 = vmatpush1.msra.mxu0 %v222
  %468 = vmatprep.subr.mxu0 0.0
  %469 = vmatpush1.msra.mxu0 %v223
  %470 = vmatprep.subr.mxu0 0.0
  %471 = vmatpush1.msra.mxu0 %v224
  %472 = vmatprep.subr.mxu0 0.0
  %473 = vmatpush1.msra.mxu0 %v225
  %474 = vmatprep.subr.mxu0 0.0
  %475 = vmatpush1.msra.mxu0 %v226
  %476 = vmatprep.subr.mxu0 0.0
  %477 = vmatpush1.msra.mxu0 %v227
  %478 = vmatprep.subr.mxu0 0.0
  %479 = vmatpush1.msra.mxu0 %v228
  %480 = vmatprep.subr.mxu0 0.0
  %481 = vmatpush1.msra.mxu0 %v229
  %482 = vmatprep.subr.mxu0 0.0
  %483 = vmatpush1.msra.mxu0 %v230
  %484 = vmatprep.subr.mxu0 0.0
  %485 = vmatpush1.msra.mxu0 %v231
  %486 = vmatprep.subr.mxu0 0.0
  %487 = vmatpush1.msra.mxu0 %v232
  %488 = vmatprep.subr.mxu0 0.0
  %489 = vmatpush1.msra.mxu0 0.0
  %490 = vmatprep.subr.mxu0 0.0
  %491 = vmatpush1.msra.mxu0 0.0
  %492 = vmatprep.subr.mxu0 0.0
  %493 = vmatpush1.msra.mxu0 0.0
  %494 = vmatprep.subr.mxu0 0.0
  %495 = vmatpush1.msra.mxu0 0.0
  %496 = vmatprep.subr.mxu0 0.0
  %497 = vmatpush1.msra.mxu0 0.0
  %498 = vmatprep.subr.mxu0 0.0
  %499 = vmatpush1.msra.mxu0 0.0
  %500 = vmatprep.subr.mxu0 0.0
  %501 = vmatpush1.msra.mxu0 0.0
  %502 = vmatprep.subr.mxu0 0.0
  %503 = vmatpush1.msra.mxu0 0.0
  %504 = vmatprep.subr.mxu0 0.0
  %505 = vmatpush1.msra.mxu0 0.0
  %506 = vmatprep.subr.mxu0 0.0
  %507 = vmatpush1.msra.mxu0 0.0
  %508 = vmatprep.subr.mxu0 0.0
  %509 = vmatpush1.msra.mxu0 0.0
  %510 = vmatprep.subr.mxu0 0.0
  %511 = vmatpush1.msra.mxu0 0.0
  %512 = vmatprep.subr.mxu0 0.0
  %513 = vmatpush1.msra.mxu0 0.0
  %514 = vmatprep.subr.mxu0 0.0
  %515 = vmatpush1.msra.mxu0 0.0
  %516 = vmatprep.subr.mxu0 0.0
  %517 = vmatpush1.msra.mxu0 0.0
  %518 = vmatprep.subr.mxu0 0.0
  %519 = vmatpush1.msra.mxu0 0.0
  %520 = vmatprep.mubr.f32.mxu0 0.0
  %521 = vmatmul.mubr.f32.gmra.mrb[0].mxu0 %v453
  %v522 = vpop.f32.mrb[0].mxu0
  %v523 = vadd.f32 0.0, %v522
  %v524 = vpop.f32.mrb[0].mxu0
  %525 = vdwg.mxu0
  %v526 = vadd.f32 %v455, %v523
  %v527 = vtanh.pop %v526
  %s528 = scalar_lea.vmem [#allocation2], 32
  %v529 = vld [vmem:[%s528] sm:$0xff]
  %530 = vmatprep.subr.mxu0 0.0
  %531 = vmatpush1.msra.mxu0 %v217
  %532 = vmatprep.subr.mxu0 0.0
  %533 = vmatpush1.msra.mxu0 %v218
  %534 = vmatprep.subr.mxu0 0.0
  %535 = vmatpush1.msra.mxu0 %v219
  %536 = vmatprep.subr.mxu0 0.0
  %537 = vmatpush1.msra.mxu0 %v220
  %538 = vmatprep.subr.mxu0 0.0
  %539 = vmatpush1.msra.mxu0 %v221
  %540 = vmatprep.subr.mxu0 0.0
  %541 = vmatpush1.msra.mxu0 %v222
  %542 = vmatprep.subr.mxu0 0.0
  %543 = vmatpush1.msra.mxu0 %v223
  %544 = vmatprep.subr.mxu0 0.0
  %545 = vmatpush1.msra.mxu0 %v224
  %546 = vmatprep.subr.mxu0 0.0
  %547 = vmatpush1.msra.mxu0 %v225
  %548 = vmatprep.subr.mxu0 0.0
  %549 = vmatpush1.msra.mxu0 %v226
  %550 = vmatprep.subr.mxu0 0.0
  %551 = vmatpush1.msra.mxu0 %v227
  %552 = vmatprep.subr.mxu0 0.0
  %553 = vmatpush1.msra.mxu0 %v228
  %554 = vmatprep.subr.mxu0 0.0
  %555 = vmatpush1.msra.mxu0 %v229
  %556 = vmatprep.subr.mxu0 0.0
  %557 = vmatpush1.msra.mxu0 %v230
  %558 = vmatprep.subr.mxu0 0.0
  %559 = vmatpush1.msra.mxu0 %v231
  %560 = vmatprep.subr.mxu0 0.0
  %561 = vmatpush1.msra.mxu0 %v232
  %562 = vmatprep.subr.mxu0 0.0
  %563 = vmatpush1.msra.mxu0 0.0
  %564 = vmatprep.subr.mxu0 0.0
  %565 = vmatpush1.msra.mxu0 0.0
  %566 = vmatprep.subr.mxu0 0.0
  %567 = vmatpush1.msra.mxu0 0.0
  %568 = vmatprep.subr.mxu0 0.0
  %569 = vmatpush1.msra.mxu0 0.0
  %570 = vmatprep.subr.mxu0 0.0
  %571 = vmatpush1.msra.mxu0 0.0
  %572 = vmatprep.subr.mxu0 0.0
  %573 = vmatpush1.msra.mxu0 0.0
  %574 = vmatprep.subr.mxu0 0.0
  %575 = vmatpush1.msra.mxu0 0.0
  %576 = vmatprep.subr.mxu0 0.0
  %577 = vmatpush1.msra.mxu0 0.0
  %578 = vmatprep.subr.mxu0 0.0
  %579 = vmatpush1.msra.mxu0 0.0
  %580 = vmatprep.subr.mxu0 0.0
  %581 = vmatpush1.msra.mxu0 0.0
  %582 = vmatprep.subr.mxu0 0.0
  %583 = vmatpush1.msra.mxu0 0.0
  %584 = vmatprep.subr.mxu0 0.0
  %585 = vmatpush1.msra.mxu0 0.0
  %586 = vmatprep.subr.mxu0 0.0
  %587 = vmatpush1.msra.mxu0 0.0
  %588 = vmatprep.subr.mxu0 0.0
  %589 = vmatpush1.msra.mxu0 0.0
  %590 = vmatprep.subr.mxu0 0.0
  %591 = vmatpush1.msra.mxu0 0.0
  %592 = vmatprep.subr.mxu0 0.0
  %593 = vmatpush1.msra.mxu0 0.0
  %594 = vmatprep.mubr.f32.mxu0 0.0
  %595 = vmatmul.mubr.f32.gmra.mrb[0].mxu0 %v527
  %v596 = vpop.f32.mrb[0].mxu0
  %v597 = vadd.f32 0.0, %v596
  %v598 = vpop.f32.mrb[0].mxu0
  %599 = vdwg.mxu0
  %v600 = vadd.f32 %v529, %v597
  %v601 = vtanh.pop %v600
  %s602 = scalar_lea.vmem [#allocation2], 40
  %v603 = vld [vmem:[%s602] sm:$0xff]
  %604 = vmatprep.subr.mxu0 0.0
  %605 = vmatpush1.msra.mxu0 %v217
  %606 = vmatprep.subr.mxu0 0.0
  %607 = vmatpush1.msra.mxu0 %v218
  %608 = vmatprep.subr.mxu0 0.0
  %609 = vmatpush1.msra.mxu0 %v219
  %610 = vmatprep.subr.mxu0 0.0
  %611 = vmatpush1.msra.mxu0 %v220
  %612 = vmatprep.subr.mxu0 0.0
  %613 = vmatpush1.msra.mxu0 %v221
  %614 = vmatprep.subr.mxu0 0.0
  %615 = vmatpush1.msra.mxu0 %v222
  %616 = vmatprep.subr.mxu0 0.0
  %617 = vmatpush1.msra.mxu0 %v223
  %618 = vmatprep.subr.mxu0 0.0
  %619 = vmatpush1.msra.mxu0 %v224
  %620 = vmatprep.subr.mxu0 0.0
  %621 = vmatpush1.msra.mxu0 %v225
  %622 = vmatprep.subr.mxu0 0.0
  %623 = vmatpush1.msra.mxu0 %v226
  %624 = vmatprep.subr.mxu0 0.0
  %625 = vmatpush1.msra.mxu0 %v227
  %626 = vmatprep.subr.mxu0 0.0
  %627 = vmatpush1.msra.mxu0 %v228
  %628 = vmatprep.subr.mxu0 0.0
  %629 = vmatpush1.msra.mxu0 %v229
  %630 = vmatprep.subr.mxu0 0.0
  %631 = vmatpush1.msra.mxu0 %v230
  %632 = vmatprep.subr.mxu0 0.0
  %633 = vmatpush1.msra.mxu0 %v231
  %634 = vmatprep.subr.mxu0 0.0
  %635 = vmatpush1.msra.mxu0 %v232
  %636 = vmatprep.subr.mxu0 0.0
  %637 = vmatpush1.msra.mxu0 0.0
  %638 = vmatprep.subr.mxu0 0.0
  %639 = vmatpush1.msra.mxu0 0.0
  %640 = vmatprep.subr.mxu0 0.0
  %641 = vmatpush1.msra.mxu0 0.0
  %642 = vmatprep.subr.mxu0 0.0
  %643 = vmatpush1.msra.mxu0 0.0
  %644 = vmatprep.subr.mxu0 0.0
  %645 = vmatpush1.msra.mxu0 0.0
  %646 = vmatprep.subr.mxu0 0.0
  %647 = vmatpush1.msra.mxu0 0.0
  %648 = vmatprep.subr.mxu0 0.0
  %649 = vmatpush1.msra.mxu0 0.0
  %650 = vmatprep.subr.mxu0 0.0
  %651 = vmatpush1.msra.mxu0 0.0
  %652 = vmatprep.subr.mxu0 0.0
  %653 = vmatpush1.msra.mxu0 0.0
  %654 = vmatprep.subr.mxu0 0.0
  %655 = vmatpush1.msra.mxu0 0.0
  %656 = vmatprep.subr.mxu0 0.0
  %657 = vmatpush1.msra.mxu0 0.0
  %658 = vmatprep.subr.mxu0 0.0
  %659 = vmatpush1.msra.mxu0 0.0
  %660 = vmatprep.subr.mxu0 0.0
  %661 = vmatpush1.msra.mxu0 0.0
  %662 = vmatprep.subr.mxu0 0.0
  %663 = vmatpush1.msra.mxu0 0.0
  %664 = vmatprep.subr.mxu0 0.0
  %665 = vmatpush1.msra.mxu0 0.0
  %666 = vmatprep.subr.mxu0 0.0
  %667 = vmatpush1.msra.mxu0 0.0
  %668 = vmatprep.mubr.f32.mxu0 0.0
  %669 = vmatmul.mubr.f32.gmra.mrb[0].mxu0 %v601
  %v670 = vpop.f32.mrb[0].mxu0
  %v671 = vadd.f32 0.0, %v670
  %v672 = vpop.f32.mrb[0].mxu0
  %673 = vdwg.mxu0
  %v674 = vadd.f32 %v603, %v671
  %v675 = vtanh.pop %v674
  %s676 = scalar_lea.vmem [#allocation2], 48
  %v677 = vld [vmem:[%s676] sm:$0xff]
  %678 = vmatprep.subr.mxu0 0.0
  %679 = vmatpush1.msra.mxu0 %v217
  %680 = vmatprep.subr.mxu0 0.0
  %681 = vmatpush1.msra.mxu0 %v218
  %682 = vmatprep.subr.mxu0 0.0
  %683 = vmatpush1.msra.mxu0 %v219
  %684 = vmatprep.subr.mxu0 0.0
  %685 = vmatpush1.msra.mxu0 %v220
  %686 = vmatprep.subr.mxu0 0.0
  %687 = vmatpush1.msra.mxu0 %v221
  %688 = vmatprep.subr.mxu0 0.0
  %689 = vmatpush1.msra.mxu0 %v222
  %690 = vmatprep.subr.mxu0 0.0
  %691 = vmatpush1.msra.mxu0 %v223
  %692 = vmatprep.subr.mxu0 0.0
  %693 = vmatpush1.msra.mxu0 %v224
  %694 = vmatprep.subr.mxu0 0.0
  %695 = vmatpush1.msra.mxu0 %v225
  %696 = vmatprep.subr.mxu0 0.0
  %697 = vmatpush1.msra.mxu0 %v226
  %698 = vmatprep.subr.mxu0 0.0
  %699 = vmatpush1.msra.mxu0 %v227
  %700 = vmatprep.subr.mxu0 0.0
  %701 = vmatpush1.msra.mxu0 %v228
  %702 = vmatprep.subr.mxu0 0.0
  %703 = vmatpush1.msra.mxu0 %v229
  %704 = vmatprep.subr.mxu0 0.0
  %705 = vmatpush1.msra.mxu0 %v230
  %706 = vmatprep.subr.mxu0 0.0
  %707 = vmatpush1.msra.mxu0 %v231
  %708 = vmatprep.subr.mxu0 0.0
  %709 = vmatpush1.msra.mxu0 %v232
  %710 = vmatprep.subr.mxu0 0.0
  %711 = vmatpush1.msra.mxu0 0.0
  %712 = vmatprep.subr.mxu0 0.0
  %713 = vmatpush1.msra.mxu0 0.0
  %714 = vmatprep.subr.mxu0 0.0
  %715 = vmatpush1.msra.mxu0 0.0
  %716 = vmatprep.subr.mxu0 0.0
  %717 = vmatpush1.msra.mxu0 0.0
  %718 = vmatprep.subr.mxu0 0.0
  %719 = vmatpush1.msra.mxu0 0.0
  %720 = vmatprep.subr.mxu0 0.0
  %721 = vmatpush1.msra.mxu0 0.0
  %722 = vmatprep.subr.mxu0 0.0
  %723 = vmatpush1.msra.mxu0 0.0
  %724 = vmatprep.subr.mxu0 0.0
  %725 = vmatpush1.msra.mxu0 0.0
  %726 = vmatprep.subr.mxu0 0.0
  %727 = vmatpush1.msra.mxu0 0.0
  %728 = vmatprep.subr.mxu0 0.0
  %729 = vmatpush1.msra.mxu0 0.0
  %730 = vmatprep.subr.mxu0 0.0
  %731 = vmatpush1.msra.mxu0 0.0
  %732 = vmatprep.subr.mxu0 0.0
  %733 = vmatpush1.msra.mxu0 0.0
  %734 = vmatprep.subr.mxu0 0.0
  %735 = vmatpush1.msra.mxu0 0.0
  %736 = vmatprep.subr.mxu0 0.0
  %737 = vmatpush1.msra.mxu0 0.0
  %738 = vmatprep.subr.mxu0 0.0
  %739 = vmatpush1.msra.mxu0 0.0
  %740 = vmatprep.subr.mxu0 0.0
  %741 = vmatpush1.msra.mxu0 0.0
  %742 = vmatprep.mubr.f32.mxu0 0.0
  %743 = vmatmul.mubr.f32.gmra.mrb[0].mxu0 %v675
  %v744 = vpop.f32.mrb[0].mxu0
  %v745 = vadd.f32 0.0, %v744
  %v746 = vpop.f32.mrb[0].mxu0
  %747 = vdwg.mxu0
  %v748 = vadd.f32 %v677, %v745
  %v749 = vtanh.pop %v748
  %s750 = scalar_lea.vmem [#allocation2], 56
  %v751 = vld [vmem:[%s750] sm:$0xff]
  %752 = vmatprep.subr.mxu0 0.0
  %753 = vmatpush1.msra.mxu0 %v217
  %754 = vmatprep.subr.mxu0 0.0
  %755 = vmatpush1.msra.mxu0 %v218
  %756 = vmatprep.subr.mxu0 0.0
  %757 = vmatpush1.msra.mxu0 %v219
  %758 = vmatprep.subr.mxu0 0.0
  %759 = vmatpush1.msra.mxu0 %v220
  %760 = vmatprep.subr.mxu0 0.0
  %761 = vmatpush1.msra.mxu0 %v221
  %762 = vmatprep.subr.mxu0 0.0
  %763 = vmatpush1.msra.mxu0 %v222
  %764 = vmatprep.subr.mxu0 0.0
  %765 = vmatpush1.msra.mxu0 %v223
  %766 = vmatprep.subr.mxu0 0.0
  %767 = vmatpush1.msra.mxu0 %v224
  %768 = vmatprep.subr.mxu0 0.0
  %769 = vmatpush1.msra.mxu0 %v225
  %770 = vmatprep.subr.mxu0 0.0
  %771 = vmatpush1.msra.mxu0 %v226
  %772 = vmatprep.subr.mxu0 0.0
  %773 = vmatpush1.msra.mxu0 %v227
  %774 = vmatprep.subr.mxu0 0.0
  %775 = vmatpush1.msra.mxu0 %v228
  %776 = vmatprep.subr.mxu0 0.0
  %777 = vmatpush1.msra.mxu0 %v229
  %778 = vmatprep.subr.mxu0 0.0
  %779 = vmatpush1.msra.mxu0 %v230
  %780 = vmatprep.subr.mxu0 0.0
  %781 = vmatpush1.msra.mxu0 %v231
  %782 = vmatprep.subr.mxu0 0.0
  %783 = vmatpush1.msra.mxu0 %v232
  %784 = vmatprep.subr.mxu0 0.0
  %785 = vmatpush1.msra.mxu0 0.0
  %786 = vmatprep.subr.mxu0 0.0
  %787 = vmatpush1.msra.mxu0 0.0
  %788 = vmatprep.subr.mxu0 0.0
  %789 = vmatpush1.msra.mxu0 0.0
  %790 = vmatprep.subr.mxu0 0.0
  %791 = vmatpush1.msra.mxu0 0.0
  %792 = vmatprep.subr.mxu0 0.0
  %793 = vmatpush1.msra.mxu0 0.0
  %794 = vmatprep.subr.mxu0 0.0
  %795 = vmatpush1.msra.mxu0 0.0
  %796 = vmatprep.subr.mxu0 0.0
  %797 = vmatpush1.msra.mxu0 0.0
  %798 = vmatprep.subr.mxu0 0.0
  %799 = vmatpush1.msra.mxu0 0.0
  %800 = vmatprep.subr.mxu0 0.0
  %801 = vmatpush1.msra.mxu0 0.0
  %802 = vmatprep.subr.mxu0 0.0
  %803 = vmatpush1.msra.mxu0 0.0
  %804 = vmatprep.subr.mxu0 0.0
  %805 = vmatpush1.msra.mxu0 0.0
  %806 = vmatprep.subr.mxu0 0.0
  %807 = vmatpush1.msra.mxu0 0.0
  %808 = vmatprep.subr.mxu0 0.0
  %809 = vmatpush1.msra.mxu0 0.0
  %810 = vmatprep.subr.mxu0 0.0
  %811 = vmatpush1.msra.mxu0 0.0
  %812 = vmatprep.subr.mxu0 0.0
  %813 = vmatpush1.msra.mxu0 0.0
  %814 = vmatprep.subr.mxu0 0.0
  %815 = vmatpush1.msra.mxu0 0.0
  %816 = vmatprep.mubr.f32.mxu0 0.0
  %817 = vmatmul.mubr.f32.gmra.mrb[0].mxu0 %v749
  %v818 = vpop.f32.mrb[0].mxu0
  %v819 = vadd.f32 0.0, %v818
  %v820 = vpop.f32.mrb[0].mxu0
  %821 = vdwg.mxu0
  %v822 = vadd.f32 %v751, %v819
  %v823 = vtanh.pop %v822
  %v824 = vld [vmem:[%s4] sm:$0xff]
  %v825 = vld [vmem:[%s4 + $0x8] sm:$0xff]
  %v826 = vld [vmem:[%s4 + $0x10] sm:$0xff]
  %v827 = vld [vmem:[%s4 + $0x18] sm:$0xff]
  %v828 = vld [vmem:[%s4 + $0x20] sm:$0xff]
  %v829 = vld [vmem:[%s4 + $0x28] sm:$0xff]
  %v830 = vld [vmem:[%s4 + $0x30] sm:$0xff]
  %v831 = vld [vmem:[%s4 + $0x38] sm:$0xff]
  %v832 = vld [vmem:[%s4 + $0x40] sm:$0xff]
  %v833 = vld [vmem:[%s4 + $0x48] sm:$0xff]
  %v834 = vld [vmem:[%s4 + $0x50] sm:$0xff]
  %v835 = vld [vmem:[%s4 + $0x58] sm:$0xff]
  %v836 = vld [vmem:[%s4 + $0x60] sm:$0xff]
  %v837 = vld [vmem:[%s4 + $0x68] sm:$0xff]
  %v838 = vld [vmem:[%s4 + $0x70] sm:$0xff]
  %v839 = vld [vmem:[%s4 + $0x78] sm:$0xff]
  %v840 = vld [vmem:[%s5] sm:$0x1]
  %v842 = vlaneseq
  %v843 = vshrl.u32 %v842, 7
  %v844 = vsub.s32 0, %v843
  %v845 = vrot.slane %v840, %v844
  %847 = vmatprep.subr.mxu0 0.0
  %848 = vmatpush1.msra.mxu0 %v824
  %849 = vmatprep.subr.mxu0 0.0
  %850 = vmatpush1.msra.mxu0 %v825
  %851 = vmatprep.subr.mxu0 0.0
  %852 = vmatpush1.msra.mxu0 %v826
  %853 = vmatprep.subr.mxu0 0.0
  %854 = vmatpush1.msra.mxu0 %v827
  %855 = vmatprep.subr.mxu0 0.0
  %856 = vmatpush1.msra.mxu0 %v828
  %857 = vmatprep.subr.mxu0 0.0
  %858 = vmatpush1.msra.mxu0 %v829
  %859 = vmatprep.subr.mxu0 0.0
  %860 = vmatpush1.msra.mxu0 %v830
  %861 = vmatprep.subr.mxu0 0.0
  %862 = vmatpush1.msra.mxu0 %v831
  %863 = vmatprep.subr.mxu0 0.0
  %864 = vmatpush1.msra.mxu0 %v832
  %865 = vmatprep.subr.mxu0 0.0
  %866 = vmatpush1.msra.mxu0 %v833
  %867 = vmatprep.subr.mxu0 0.0
  %868 = vmatpush1.msra.mxu0 %v834
  %869 = vmatprep.subr.mxu0 0.0
  %870 = vmatpush1.msra.mxu0 %v835
  %871 = vmatprep.subr.mxu0 0.0
  %872 = vmatpush1.msra.mxu0 %v836
  %873 = vmatprep.subr.mxu0 0.0
  %874 = vmatpush1.msra.mxu0 %v837
  %875 = vmatprep.subr.mxu0 0.0
  %876 = vmatpush1.msra.mxu0 %v838
  %877 = vmatprep.subr.mxu0 0.0
  %878 = vmatpush1.msra.mxu0 %v839
  %879 = vmatprep.subr.mxu0 0.0
  %880 = vmatpush1.msra.mxu0 0.0
  %881 = vmatprep.subr.mxu0 0.0
  %882 = vmatpush1.msra.mxu0 0.0
  %883 = vmatprep.subr.mxu0 0.0
  %884 = vmatpush1.msra.mxu0 0.0
  %885 = vmatprep.subr.mxu0 0.0
  %886 = vmatpush1.msra.mxu0 0.0
  %887 = vmatprep.subr.mxu0 0.0
  %888 = vmatpush1.msra.mxu0 0.0
  %889 = vmatprep.subr.mxu0 0.0
  %890 = vmatpush1.msra.mxu0 0.0
  %891 = vmatprep.subr.mxu0 0.0
  %892 = vmatpush1.msra.mxu0 0.0
  %893 = vmatprep.subr.mxu0 0.0
  %894 = vmatpush1.msra.mxu0 0.0
  %895 = vmatprep.subr.mxu0 0.0
  %896 = vmatpush1.msra.mxu0 0.0
  %897 = vmatprep.subr.mxu0 0.0
  %898 = vmatpush1.msra.mxu0 0.0
  %899 = vmatprep.subr.mxu0 0.0
  %900 = vmatpush1.msra.mxu0 0.0
  %901 = vmatprep.subr.mxu0 0.0
  %902 = vmatpush1.msra.mxu0 0.0
  %903 = vmatprep.subr.mxu0 0.0
  %904 = vmatpush1.msra.mxu0 0.0
  %905 = vmatprep.subr.mxu0 0.0
  %906 = vmatpush1.msra.mxu0 0.0
  %907 = vmatprep.subr.mxu0 0.0
  %908 = vmatpush1.msra.mxu0 0.0
  %909 = vmatprep.subr.mxu0 0.0
  %910 = vmatpush1.msra.mxu0 0.0
  %911 = vmatprep.mubr.f32.mxu0 0.0
  %912 = vmatmul.mubr.f32.gmra.mrb[0].mxu0 %v823
  %v913 = vpop.f32.mrb[0].mxu0
  %v914 = vadd.f32 %v845, %v913
  %v915 = vpop.f32.mrb[0].mxu0
  %916 = vdwg.mxu0
  %917 = vst [vmem:[%s6] sm:$0xff] %v914
  // Predicated region
  $region26: #{simple_rnn_with_embeddings.1} parent=0 // pred_check
    _
  $region27: #{simple_rnn_with_embeddings.1} parent=0 // pred_check_branch
    %919 = sbr.rel (0) target = $region29
  $region28: #{simple_rnn_with_embeddings.1} parent=0 // pred_region
    _
  $region29: #{simple_rnn_with_embeddings.1} parent=0 // pred_fallthru
    _
  // Predicated region
  $region30: #{simple_rnn_with_embeddings.1} parent=0 // pred_check
    _
  $region31: #{simple_rnn_with_embeddings.1} parent=0 // pred_check_branch
    %921 = sbr.rel (0) target = $region33
  $region32: #{simple_rnn_with_embeddings.1} parent=0 // pred_region
    _
  $region33: #{simple_rnn_with_embeddings.1} parent=0 // pred_fallthru
    _

</llo_original>
